<compile_context>
chip_gen: v7x
topology: tpu7x:2x2x1
jax: 0.10.0
libtpu: 0.0.40
codegen_flags: <defaults>
</compile_context>

<pallas_src>
import math

import jax
import jax.numpy as jnp
from jax.experimental import pallas as pl
from jax.experimental.pallas import tpu as pltpu


def _make_weighted_kernel(n: int):
    """y = x0 + sum_i w[i] * x[i+1], weights are SMEM scalars."""

    def kernel(w_ref, *refs):
        x_refs = refs[:n]
        o_ref = refs[n]
        y = x_refs[0][...].astype(jnp.float32)
        # n is static -> unrolled FMA chain on the VPU (mem-bound, fully hidden)
        for i in range(1, n):
            y = y + x_refs[i][...].astype(jnp.float32) * w_ref[i - 1]
        o_ref[...] = y.astype(o_ref.dtype)

    return kernel


def _make_plain_kernel(n: int):
    """y = x0 + x1 + ... (weight=False specialization: no SMEM arg, no muls)."""

    def kernel(*refs):
        x_refs = refs[:n]
        o_ref = refs[n]
        y = x_refs[0][...].astype(jnp.float32)
        for i in range(1, n):
            y = y + x_refs[i][...].astype(jnp.float32)
        o_ref[...] = y.astype(o_ref.dtype)

    return kernel


def _choose_layout(total: int, n_inputs: int, itemsize: int):
    """Pick (lane, tile_rows) so tiles are lane-dense and fit the VMEM budget."""
    # Lane width: multiple of 128, shrink for tiny inputs to avoid over-padding.
    lane = 1024
    while lane > 128 and total < lane * 8:
        lane //= 2
    rows = -(-total // lane)  # cdiv

    # VMEM budget: double-buffered (n inputs + 1 output) tiles must fit ~24 MiB.
    budget_bytes = 24 * 1024 * 1024
    per_row = 2 * (n_inputs + 1) * lane * itemsize
    max_tile_r = max(8, (budget_bytes // per_row) // 8 * 8)
    tile_r = min(512, max_tile_r, ((rows + 7) // 8) * 8)

    grid_r = -(-rows // tile_r)
    rows_padded = grid_r * tile_r
    return lane, tile_r, grid_r, rows_padded


def pallas_weighted_sum(xs, weight: bool = False):
    """Equivalent of Sum(n, weight).forward(xs) for a list of NCHW tensors."""
    n = len(xs)
    assert n >= 2, "Sum expects at least 2 inputs"
    shape = xs[0].shape
    dtype = xs[0].dtype
    for x in xs:
        assert x.shape == shape, "all inputs must share the same shape"
        assert x.dtype == dtype, "all inputs must share the same dtype"

    total = math.prod(shape)
    itemsize = jnp.dtype(dtype).itemsize
    lane, tile_r, grid_r, rows_padded = _choose_layout(total, n, itemsize)
    padded_total = rows_padded * lane

    # Flatten to lane-dense 2-D slabs, zero-padding the tail if needed.
    flat = [jnp.ravel(x) for x in xs]
    if padded_total != total:
        flat = [jnp.pad(f, (0, padded_total - total)) for f in flat]
    xs2d = [f.reshape(rows_padded, lane) for f in flat]

    block = pl.BlockSpec((tile_r, lane), lambda i: (i, 0))

    cost = pl.CostEstimate(
        flops=2 * (n - 1) * total,
        transcendentals=0,
        bytes_accessed=(n + 1) * total * itemsize,
    )
    cparams = pltpu.CompilerParams(
        dimension_semantics=("parallel",),      # shard grid across TCs on v7x
        vmem_limit_bytes=32 * 1024 * 1024,      # explicit, safe on v5e/v6e/v7x
    )
    out_shape = jax.ShapeDtypeStruct((rows_padded, lane), dtype)

    if weight:
        # Deterministic parameter init, matching nn.Parameter(-arange(1., n) / 2)
        w_param = -jnp.arange(1.0, n, dtype=jnp.float32) / 2.0
        w = jax.nn.sigmoid(w_param) * 2.0
        out2d = pl.pallas_call(
            _make_weighted_kernel(n),
            out_shape=out_shape,
            grid=(grid_r,),
            in_specs=[pl.BlockSpec(memory_space=pltpu.SMEM)]  # weights -> SMEM scalars
            + [block] * n,
            out_specs=block,
            compiler_params=cparams,
            cost_estimate=cost,
        )(w, *xs2d)
    else:
        out2d = pl.pallas_call(
            _make_plain_kernel(n),
            out_shape=out_shape,
            grid=(grid_r,),
            in_specs=[block] * n,
            out_specs=block,
            compiler_params=cparams,
            cost_estimate=cost,
        )(*xs2d)

    return out2d.reshape(-1)[:total].reshape(shape)


def _reference(xs, weight: bool = False):
    """Pure-JAX reference mirroring the PyTorch forward."""
    n = len(xs)
    y = xs[0]
    if weight:
        w = jax.nn.sigmoid(-jnp.arange(1.0, n, dtype=jnp.float32) / 2.0) * 2.0
        for i in range(n - 1):
            y = y + xs[i + 1] * w[i]
    else:
        for i in range(n - 1):
            y = y + xs[i + 1]
    return y


if __name__ == "__main__":
    key = jax.random.PRNGKey(0)
    n = 3                      # fuse 3 feature maps
    B, C, H, W = 2, 4, 16, 16  # NCHW, small synthetic shapes

    keys = jax.random.split(key, n)
    xs = [jax.random.normal(k, (B, C, H, W), dtype=jnp.float32) for k in keys]

    # weighted variant (Sum(n, weight=True))
    out_w = pallas_weighted_sum(xs, weight=True)
    out_w = jax.block_until_ready(out_w)
    ref_w = _reference(xs, weight=True)

    # unweighted variant (Sum(n, weight=False))
    out_u = pallas_weighted_sum(xs, weight=False)
    out_u = jax.block_until_ready(out_u)
    ref_u = _reference(xs, weight=False)

    assert out_w.shape == (B, C, H, W) and out_w.dtype == jnp.float32
    assert jnp.allclose(out_w, ref_w, atol=1e-5, rtol=1e-5)
    assert jnp.allclose(out_u, ref_u, atol=1e-5, rtol=1e-5)

    print("KERNEL_OK")
</pallas_src>

<mosaic_0001>
module attributes {stable_mosaic.version = 11 : i64} {
  func.func @kernel(%arg0: i32, %arg1: memref<2xf32, #tpu.memory_space<smem>>, %arg2: memref<8x256xf32, #tpu.memory_space<vmem>>, %arg3: memref<8x256xf32, #tpu.memory_space<vmem>>, %arg4: memref<8x256xf32, #tpu.memory_space<vmem>>, %arg5: memref<8x256xf32, #tpu.memory_space<vmem>>) attributes {dimension_semantics = [#tpu.dimension_semantics<parallel>], iteration_bounds = array<i64: 1>, scalar_prefetch = 0 : i64, scratch_operands = 0 : i64, tpu.core_type = #tpu.core_type<tc>, window_params = [{transform_indices = @transform_0, window_bounds = array<i64: 2>}, {transform_indices = @transform_1, window_bounds = array<i64: 8, 256>}, {transform_indices = @transform_2, window_bounds = array<i64: 8, 256>}, {transform_indices = @transform_3, window_bounds = array<i64: 8, 256>}, {transform_indices = @transform_4, window_bounds = array<i64: 8, 256>}]} {
    %c0 = arith.constant 0 : index
    %c0_0 = arith.constant 0 : index
    %0 = vector.load %arg2[%c0, %c0_0] : memref<8x256xf32, #tpu.memory_space<vmem>>, vector<8x256xf32>
    %c0_1 = arith.constant 0 : index
    %c0_2 = arith.constant 0 : index
    %1 = vector.load %arg3[%c0_1, %c0_2] : memref<8x256xf32, #tpu.memory_space<vmem>>, vector<8x256xf32>
    %c0_3 = arith.constant 0 : index
    %2 = memref.load %arg1[%c0_3] : memref<2xf32, #tpu.memory_space<smem>>
    %3 = vector.broadcast %2 : f32 to vector<8x256xf32>
    %4 = arith.mulf %1, %3 : vector<8x256xf32>
    %5 = arith.addf %0, %4 : vector<8x256xf32>
    %c0_4 = arith.constant 0 : index
    %c0_5 = arith.constant 0 : index
    %6 = vector.load %arg4[%c0_4, %c0_5] : memref<8x256xf32, #tpu.memory_space<vmem>>, vector<8x256xf32>
    %c1 = arith.constant 1 : index
    %7 = memref.load %arg1[%c1] : memref<2xf32, #tpu.memory_space<smem>>
    %8 = vector.broadcast %7 : f32 to vector<8x256xf32>
    %9 = arith.mulf %6, %8 : vector<8x256xf32>
    %10 = arith.addf %5, %9 : vector<8x256xf32>
    %c0_6 = arith.constant 0 : index
    %c0_7 = arith.constant 0 : index
    %11 = vector.load %arg5[%c0_6, %c0_7] : memref<8x256xf32, #tpu.memory_space<vmem>>, vector<8x256xf32>
    tpu.vector_store %arg5[%c0_6, %c0_7], %10 {strides = array<i32>} : memref<8x256xf32, #tpu.memory_space<vmem>>, vector<8x256xf32>,
    return
  }
  func.func @transform_0(%arg0: i32) -> i32 {
    %c0_i32 = arith.constant 0 : i32
    %c0_i32_0 = arith.constant 0 : i32
    return %c0_i32 : i32
  }
  func.func @transform_1(%arg0: i32) -> (i32, i32) {
    %c0_i32 = arith.constant 0 : i32
    %c0_i32_0 = arith.constant 0 : i32
    return %arg0, %c0_i32 : i32, i32
  }
  func.func @transform_2(%arg0: i32) -> (i32, i32) {
    %c0_i32 = arith.constant 0 : i32
    %c0_i32_0 = arith.constant 0 : i32
    return %arg0, %c0_i32 : i32, i32
  }
  func.func @transform_3(%arg0: i32) -> (i32, i32) {
    %c0_i32 = arith.constant 0 : i32
    %c0_i32_0 = arith.constant 0 : i32
    return %arg0, %c0_i32 : i32, i32
  }
  func.func @transform_4(%arg0: i32) -> (i32, i32) {
    %c0_i32 = arith.constant 0 : i32
    %c0_i32_0 = arith.constant 0 : i32
    return %arg0, %c0_i32 : i32, i32
  }
}

</mosaic_0001>

<llo_original>
// kernel: tpu_custom_call.1
$region0: #{tpu_custom_call.1}
  #allocation0 [shape = 'u32[]', space=smem, size = 0x4, offset = 0x4, fixed_abs, tag = 'smem constant byte address 0x4 - core index']
  #allocation1 [shape = 'u32[144,128]{1,0:T(1,128)}', space=vmem, size = 0x12000, scoped, tag = 'internal scratch']
  %s0 = inlined_call_operand.hbm [shape: f32[2], index: 0, kind: input, shape index: {}]
  %s1 = inlined_call_operand.hbm [shape: f32[8,256], index: 1, kind: input, shape index: {}]
  %s2 = inlined_call_operand.hbm [shape: f32[8,256], index: 2, kind: input, shape index: {}]
  %s3 = inlined_call_operand.hbm [shape: f32[8,256], index: 3, kind: input, shape index: {}]
  %s4 = inlined_call_operand.hbm [shape: f32[8,256], index: 4, kind: output, shape index: {}]
  %s5 = sld [smem:[#allocation0]]
  $region42: #{tpu_custom_call.1} parent=0
    _
  %s7 = ssub.s32 1, %s5
  %s8 = scalar_select 0, %s7, %s5
  $region1: #{tpu_custom_call.1} parent=0
    #allocation2 [shape = 'u8[512]{0}', space=smem, size = 0x200, scoped, tag = 'input window, operand 0, single buffered']
    #allocation3 [shape = 's32[1]{0}', space=sflag, size = 0x4, scoped, tag = 'scoped memory for tpu_custom_call.1']
    #allocation4 [shape = 's32[1]{0}', space=sflag, size = 0x4, scoped, tag = 'scoped memory for tpu_custom_call.1']
    #allocation5 [shape = 's32[1]{0}', space=sflag, size = 0x4, scoped, tag = 'scoped memory for tpu_custom_call.1']
    #allocation6 [shape = 'u8[8192]{0}', space=vmem, size = 0x2000, scoped, tag = 'input window, operand 1, single buffered']
    #allocation7 [shape = 'u8[8192]{0}', space=vmem, size = 0x2000, scoped, tag = 'input window, operand 2, single buffered']
    #allocation8 [shape = 's32[1]{0}', space=sflag, size = 0x4, scoped, tag = 'scoped memory for tpu_custom_call.1']
    #allocation9 [shape = 'u8[8192]{0}', space=vmem, size = 0x2000, scoped, tag = 'input window, operand 3, single buffered']
    #allocation10 [shape = 'u8[8192]{0}', space=vmem, size = 0x2000, scoped, tag = 'output window, operand 0, single buffered']
    %9 = vsyncpa [#allocation5], 0
    %10 = vsyncpa [#allocation3], 0
    %11 = vsyncpa [#allocation8], 0
    %12 = vsyncpa [#allocation4], 0
    // Predicated region
    $region2: #{tpu_custom_call.1} parent=1 // pred_check
      _
    $region3: #{tpu_custom_call.1} parent=1 // pred_check_branch
      %14 = sbr.rel (0) target = $region5
    $region4: #{tpu_custom_call.1} parent=1 // pred_region
      %s16 = ssub.s32 16, 16
      %17 = vsyncadd [#allocation5], %s16
      %20 = dma.hbm_to_smem %s0, 16, [#allocation2], [#allocation5]
    $region5: #{tpu_custom_call.1} parent=1 // pred_fallthru
      _
    // Predicated region
    $region6: #{tpu_custom_call.1} parent=1 // pred_check
      _
    $region7: #{tpu_custom_call.1} parent=1 // pred_check_branch
      %22 = sbr.rel (0) target = $region9
    $region8: #{tpu_custom_call.1} parent=1 // pred_region
      %s24 = ssub.s32 256, 256
      %25 = vsyncadd [#allocation3], %s24
      %s27 = sshll.u32 [#allocation6], 4
      %s28 = int_to_ptr.vmem [resolvable:$true] %s27
      %30 = dma.hbm_to_vmem [thread:$0]  %s1, 256, %s28, [#allocation3]
    $region9: #{tpu_custom_call.1} parent=1 // pred_fallthru
      _
    // Predicated region
    $region10: #{tpu_custom_call.1} parent=1 // pred_check
      _
    $region11: #{tpu_custom_call.1} parent=1 // pred_check_branch
      %32 = sbr.rel (0) target = $region13
    $region12: #{tpu_custom_call.1} parent=1 // pred_region
      %s34 = ssub.s32 256, 256
      %35 = vsyncadd [#allocation8], %s34
      %s37 = sshll.u32 [#allocation7], 4
      %s38 = int_to_ptr.vmem [resolvable:$true] %s37
      %40 = dma.hbm_to_vmem [thread:$0]  %s2, 256, %s38, [#allocation8]
    $region13: #{tpu_custom_call.1} parent=1 // pred_fallthru
      _
    // Predicated region
    $region14: #{tpu_custom_call.1} parent=1 // pred_check
      _
    $region15: #{tpu_custom_call.1} parent=1 // pred_check_branch
      %42 = sbr.rel (0) target = $region17
    $region16: #{tpu_custom_call.1} parent=1 // pred_region
      %s44 = ssub.s32 256, 256
      %45 = vsyncadd [#allocation8], %s44
      %s47 = sshll.u32 [#allocation9], 4
      %s48 = int_to_ptr.vmem [resolvable:$true] %s47
      %50 = dma.hbm_to_vmem [thread:$0]  %s3, 256, %s48, [#allocation8]
    $region17: #{tpu_custom_call.1} parent=1 // pred_fallthru
      _
    // Predicated region
    $region18: #{tpu_custom_call.1} parent=1 // pred_check
      _
    $region19: #{tpu_custom_call.1} parent=1 // pred_check_branch
      %52 = sbr.rel (0) target = $region21
    $region20: #{tpu_custom_call.1} parent=1 // pred_region
      %53 = dma.done [#allocation5], 16
    $region21: #{tpu_custom_call.1} parent=1 // pred_fallthru
      _
    // Predicated region
    $region22: #{tpu_custom_call.1} parent=1 // pred_check
      _
    $region23: #{tpu_custom_call.1} parent=1 // pred_check_branch
      %55 = sbr.rel (0) target = $region25
    $region24: #{tpu_custom_call.1} parent=1 // pred_region
      %56 = dma.done [#allocation3], 256
    $region25: #{tpu_custom_call.1} parent=1 // pred_fallthru
      _
    // Predicated region
    $region26: #{tpu_custom_call.1} parent=1 // pred_check
      _
    $region27: #{tpu_custom_call.1} parent=1 // pred_check_branch
      %58 = sbr.rel (0) target = $region29
    $region28: #{tpu_custom_call.1} parent=1 // pred_region
      %59 = dma.done [#allocation8], 256
    $region29: #{tpu_custom_call.1} parent=1 // pred_fallthru
      _
    // Predicated region
    $region30: #{tpu_custom_call.1} parent=1 // pred_check
      _
    $region31: #{tpu_custom_call.1} parent=1 // pred_check_branch
      %61 = sbr.rel (0) target = $region33
    $region32: #{tpu_custom_call.1} parent=1 // pred_region
      %62 = dma.done [#allocation8], 256
    $region33: #{tpu_custom_call.1} parent=1 // pred_fallthru
      _
    %63 = sfence
    %v64 = vld [vmem:[#allocation6] sm:$0xff]
    %v65 = vld [vmem:[#allocation6 + $0x8] sm:$0xff]
    %v66 = vld [vmem:[#allocation7] sm:$0xff]
    %v67 = vld [vmem:[#allocation7 + $0x8] sm:$0xff]
    %s68 = sld [smem:[#allocation2]]
    %v69 = vstv %s68
    %v70 = vmul.f32 %v66, %v69
    %v71 = vmul.f32 %v67, %v69
    %v72 = vadd.f32 %v64, %v70
    %v73 = vadd.f32 %v65, %v71
    %v74 = vld [vmem:[#allocation9] sm:$0xff]
    %v75 = vld [vmem:[#allocation9 + $0x8] sm:$0xff]
    %s76 = sld [smem:[#allocation2 + $0x1]]
    %v77 = vstv %s76
    %v78 = vmul.f32 %v74, %v77
    %v79 = vmul.f32 %v75, %v77
    %v80 = vadd.f32 %v72, %v78
    %v81 = vadd.f32 %v73, %v79
    %82 = vst [vmem:[#allocation10] sm:$0xff] %v80
    %83 = vst [vmem:[#allocation10 + $0x8] sm:$0xff] %v81
    // Predicated region
    $region34: #{tpu_custom_call.1} parent=1 // pred_check
      _
    $region35: #{tpu_custom_call.1} parent=1 // pred_check_branch
      %85 = sbr.rel (0) target = $region37
    $region36: #{tpu_custom_call.1} parent=1 // pred_region
      %s87 = ssub.s32 256, 256
      %88 = vsyncadd [#allocation4], %s87
      %s90 = sshll.u32 [#allocation10], 4
      %s91 = int_to_ptr.vmem [resolvable:$true] %s90
      %93 = dma.vmem_to_hbm [thread:$0]  %s91, 256, %s4, [#allocation4]
    $region37: #{tpu_custom_call.1} parent=1 // pred_fallthru
      _
    // Predicated region
    $region38: #{tpu_custom_call.1} parent=1 // pred_check
      _
    $region39: #{tpu_custom_call.1} parent=1 // pred_check_branch
      %95 = sbr.rel (0) target = $region41
    $region40: #{tpu_custom_call.1} parent=1 // pred_region
      %96 = dma.done [#allocation4], 256
    $region41: #{tpu_custom_call.1} parent=1 // pred_fallthru
      _
    %97 = vsyncpa [#allocation3], 1
    %98 = vsyncpa [#allocation8], 1
    %99 = vsyncpa [#allocation4], 1
    %100 = vsyncpa [#allocation5], 1

</llo_original>
